<compile_context>
chip_gen: v7x
topology: tpu7x:2x2x1
jax: 0.10.0
libtpu: 0.0.40
codegen_flags: <defaults>
</compile_context>

<pallas_src>
import jax
import jax.numpy as jnp
from jax.experimental import pallas as pl
from jax.experimental.pallas import tpu as pltpu


def _round_up(n, m):
    return ((n + m - 1) // m) * m


_MAX_TM = 1024  # rows per grid step; activations per tile stay far below scoped VMEM


def _tile_rows(B):
    """Pick the batch row tile.

    Small batches: one full-batch tile (block dim == full array dim is always legal).
    Larger batches: at least 2 grid steps (tile a multiple of 8 rows) so the
    "parallel" grid axis can shard the batch across v7x's two TensorCores,
    capped at _MAX_TM to amortize per-grid-step overhead.
    """
    if B <= 128:
        return B
    return min(_MAX_TM, _round_up(pl.cdiv(B, 2), 8))


# ----------------------------- Pallas kernels --------------------------------

def _gen_base_kernel(zc_ref, w1_ref, b1_ref, w3_ref, b3_ref, x_ref, x1_ref):
    """x1 = lrelu(zc @ W1 + b1); x = x1 @ W3 + b3.  (no feedback; both outputs stored)"""
    cdt = w1_ref.dtype                                   # bf16 compute dtype for the MXU
    h = jnp.dot(zc_ref[...].astype(cdt), w1_ref[...],
                preferred_element_type=jnp.float32) + b1_ref[...]
    x1 = jnp.where(h > 0, h, 0.2 * h)                    # LeakyReLU(0.2), f32
    x1_ref[...] = x1.astype(x1_ref.dtype)                # mirrors PyTorch self.out
    x = jnp.dot(x1.astype(cdt), w3_ref[...],
                preferred_element_type=jnp.float32) + b3_ref[...]
    x_ref[...] = x.astype(x_ref.dtype)


def _gen_feedback_kernel(a1_ref, zc_ref, fb_ref, w1_ref, b1_ref, w3_ref, b3_ref, x_ref):
    """x = (lrelu(zc @ W1 + b1) + a1 * fb) @ W3 + b3.  (x1 is NOT written back)"""
    cdt = w1_ref.dtype
    h = jnp.dot(zc_ref[...].astype(cdt), w1_ref[...],
                preferred_element_type=jnp.float32) + b1_ref[...]
    x1 = jnp.where(h > 0, h, 0.2 * h)
    a1 = a1_ref[0, 0]                                    # scalar gain (SMEM)
    fb_in = x1 + a1 * fb_ref[...]                        # f32
    x = jnp.dot(fb_in.astype(cdt), w3_ref[...],
                preferred_element_type=jnp.float32) + b3_ref[...]
    x_ref[...] = x.astype(x_ref.dtype)


# --------------------------- jitted apply wrappers ----------------------------

@jax.jit
def _apply_base(z, c, w1, b1, w3, b3):
    zc = jnp.concatenate([z, c], axis=-1)                # fused fc1: single K=32 MXU pass
    B, din = zc.shape
    h0, h1 = w1.shape[1], w3.shape[1]
    tm = _tile_rows(B)
    grid = (pl.cdiv(B, tm),)
    return pl.pallas_call(
        _gen_base_kernel,
        grid=grid,
        in_specs=[
            pl.BlockSpec((tm, din), lambda i: (i, 0)),   # zc tile
            pl.BlockSpec((din, h0), lambda i: (0, 0)),   # W1 (VMEM-resident)
            pl.BlockSpec((1, h0), lambda i: (0, 0)),     # b1
            pl.BlockSpec((h0, h1), lambda i: (0, 0)),    # W3 (VMEM-resident)
            pl.BlockSpec((1, h1), lambda i: (0, 0)),     # b3
        ],
        out_specs=(
            pl.BlockSpec((tm, h1), lambda i: (i, 0)),    # x
            pl.BlockSpec((tm, h0), lambda i: (i, 0)),    # x1 (== self.out)
        ),
        out_shape=(
            jax.ShapeDtypeStruct((B, h1), jnp.float32),
            jax.ShapeDtypeStruct((B, h0), jnp.float32),
        ),
        compiler_params=pltpu.CompilerParams(dimension_semantics=("parallel",)),
    )(zc, w1, b1, w3, b3)


@jax.jit
def _apply_feedback(z, c, fb, a1, w1, b1, w3, b3):
    zc = jnp.concatenate([z, c], axis=-1)
    B, din = zc.shape
    h0, h1 = w1.shape[1], w3.shape[1]
    tm = _tile_rows(B)
    grid = (pl.cdiv(B, tm),)
    a1_smem = jnp.asarray(a1, jnp.float32).reshape(1, 1)
    return pl.pallas_call(
        _gen_feedback_kernel,
        grid=grid,
        in_specs=[
            pl.BlockSpec(memory_space=pltpu.MemorySpace.SMEM),  # a1 scalar
            pl.BlockSpec((tm, din), lambda i: (i, 0)),          # zc tile
            pl.BlockSpec((tm, h0), lambda i: (i, 0)),           # feedback tile (unpadded)
            pl.BlockSpec((din, h0), lambda i: (0, 0)),          # W1
            pl.BlockSpec((1, h0), lambda i: (0, 0)),            # b1
            pl.BlockSpec((h0, h1), lambda i: (0, 0)),           # W3
            pl.BlockSpec((1, h1), lambda i: (0, 0)),            # b3
        ],
        out_specs=pl.BlockSpec((tm, h1), lambda i: (i, 0)),     # x only
        out_shape=jax.ShapeDtypeStruct((B, h1), jnp.float32),
        compiler_params=pltpu.CompilerParams(dimension_semantics=("parallel",)),
    )(a1_smem, zc, fb, w1, b1, w3, b3)


# ------------------------------ module wrapper --------------------------------

class GeneratorPallas:
    """JAX/Pallas re-implementation of models/model.py::Generator (forward pass)."""

    def __init__(self, latent_size, att_size, decoder_layer_sizes, key):
        h0, h1 = decoder_layer_sizes
        in_size = latent_size + att_size
        self.latent_size, self.att_size, self.h0, self.h1 = latent_size, att_size, h0, h1

        k1, k2 = jax.random.split(key, 2)
        # weights_init: Linear weight ~ N(0, 0.02), bias = 0.  Stored (in, out).
        self.w1 = (0.02 * jax.random.normal(k1, (in_size, h0))).astype(jnp.float32)
        self.b1 = jnp.zeros((h0,), jnp.float32)
        self.w3 = (0.02 * jax.random.normal(k2, (h0, h1))).astype(jnp.float32)
        self.b3 = jnp.zeros((h1,), jnp.float32)

        # bf16 compute copies for the MXU (accumulation stays f32); biases stay f32.
        self.w1_c = self.w1.astype(jnp.bfloat16)
        self.w3_c = self.w3.astype(jnp.bfloat16)
        self.b1_2d = self.b1.reshape(1, h0)
        self.b3_2d = self.b3.reshape(1, h1)

        self.out = None  # mirrors PyTorch self.out (set only on the no-feedback path)

    def __call__(self, z, a1=None, c=None, feedback_layers=None):
        z = jnp.asarray(z, jnp.float32)
        c = jnp.asarray(c, jnp.float32)
        if feedback_layers is None:
            x, x1 = _apply_base(z, c, self.w1_c, self.b1_2d, self.w3_c, self.b3_2d)
            self.out = x1
            return x
        fb = jnp.asarray(feedback_layers, jnp.float32)
        return _apply_feedback(z, c, fb, a1,
                               self.w1_c, self.b1_2d, self.w3_c, self.b3_2d)


# ----------------------------- reference (JAX) --------------------------------

def _reference(gen, z, c, a1=None, feedback_layers=None):
    zc = jnp.concatenate([z, c], axis=-1)
    h = zc @ gen.w1 + gen.b1
    x1 = jnp.where(h > 0, h, 0.2 * h)
    pre = x1 if feedback_layers is None else x1 + a1 * feedback_layers
    return pre @ gen.w3 + gen.b3, x1


# ---------------------------------- main ---------------------------------------

if __name__ == "__main__":
    key = jax.random.PRNGKey(0)
    k_param, k_z, k_c, k_fb = jax.random.split(key, 4)

    # small synthetic "opt": latent_size=16, attSize=16, decoder_layer_sizes=[64, 32]
    latent_size, att_size = 16, 16
    decoder_layer_sizes = (64, 32)
    batch = 8

    gen = GeneratorPallas(latent_size, att_size, decoder_layer_sizes, k_param)

    z = jax.random.normal(k_z, (batch, latent_size), jnp.float32)
    c = jax.random.normal(k_c, (batch, att_size), jnp.float32)
    feedback = jax.random.normal(k_fb, (batch, decoder_layer_sizes[0]), jnp.float32)
    a1 = 0.5

    # bf16 MXU compute => loosened tolerances vs the f32 reference.
    tol = dict(atol=2e-2, rtol=2e-2)

    # Path 1: no feedback (Generator._forward); also sets self.out = x1.
    x = jax.block_until_ready(gen(z, c=c))
    ref_x, ref_x1 = _reference(gen, z, c)
    assert jnp.allclose(x, ref_x, **tol), "base path mismatch"
    assert jnp.allclose(gen.out, ref_x1, **tol), "self.out (x1) mismatch"

    # Path 2: feedback.
    xf = jax.block_until_ready(gen(z, a1=a1, c=c, feedback_layers=feedback))
    ref_xf, _ = _reference(gen, z, c, a1=a1, feedback_layers=feedback)
    assert jnp.allclose(xf, ref_xf, **tol), "feedback path mismatch"

    # Larger-batch smoke test to exercise the multi-step ("parallel") grid path.
    kz2, kc2, kf2 = jax.random.split(jax.random.PRNGKey(1), 3)
    B2 = 384
    z2 = jax.random.normal(kz2, (B2, latent_size), jnp.float32)
    c2 = jax.random.normal(kc2, (B2, att_size), jnp.float32)
    f2 = jax.random.normal(kf2, (B2, decoder_layer_sizes[0]), jnp.float32)
    x2 = jax.block_until_ready(gen(z2, a1=a1, c=c2, feedback_layers=f2))
    ref_x2, _ = _reference(gen, z2, c2, a1=a1, feedback_layers=f2)
    assert jnp.allclose(x2, ref_x2, **tol), "tiled feedback path mismatch"

    print("KERNEL_OK")
</pallas_src>

<mosaic_0001>
module attributes {stable_mosaic.version = 11 : i64} {
  func.func @_gen_base_kernel(%arg0: i32, %arg1: memref<8x32xf32, #tpu.memory_space<vmem>>, %arg2: memref<32x64xbf16, #tpu.memory_space<vmem>>, %arg3: memref<1x64xf32, #tpu.memory_space<vmem>>, %arg4: memref<64x32xbf16, #tpu.memory_space<vmem>>, %arg5: memref<1x32xf32, #tpu.memory_space<vmem>>, %arg6: memref<8x32xf32, #tpu.memory_space<vmem>>, %arg7: memref<8x64xf32, #tpu.memory_space<vmem>>) attributes {dimension_semantics = [#tpu.dimension_semantics<parallel>], iteration_bounds = array<i64: 1>, scalar_prefetch = 0 : i64, scratch_operands = 0 : i64, tpu.core_type = #tpu.core_type<tc>, window_params = [{transform_indices = @transform_0, window_bounds = array<i64: 8, 32>}, {pipeline_mode = #tpu.pipeline_mode<synchronous>, transform_indices = @transform_1, window_bounds = array<i64: 32, 64>}, {pipeline_mode = #tpu.pipeline_mode<synchronous>, transform_indices = @transform_2, window_bounds = array<i64: 1, 64>}, {pipeline_mode = #tpu.pipeline_mode<synchronous>, transform_indices = @transform_3, window_bounds = array<i64: 64, 32>}, {pipeline_mode = #tpu.pipeline_mode<synchronous>, transform_indices = @transform_4, window_bounds = array<i64: 1, 32>}, {transform_indices = @transform_5, window_bounds = array<i64: 8, 32>}, {transform_indices = @transform_6, window_bounds = array<i64: 8, 64>}]} {
    %c0 = arith.constant 0 : index
    %c0_0 = arith.constant 0 : index
    %0 = vector.load %arg1[%c0, %c0_0] : memref<8x32xf32, #tpu.memory_space<vmem>>, vector<8x32xf32>
    %1 = arith.truncf %0 : vector<8x32xf32> to vector<8x32xbf16>
    %c0_1 = arith.constant 0 : index
    %c0_2 = arith.constant 0 : index
    %2 = vector.load %arg2[%c0_1, %c0_2] : memref<32x64xbf16, #tpu.memory_space<vmem>>, vector<32x64xbf16>
    %cst = arith.constant dense<0.000000e+00> : vector<8x64xf32>
    %3 = tpu.matmul %1, %2, %cst {dimension_numbers = #tpu.dot_dimension_numbers<[1], [0], [0], [1], [0, 0, 1, 1], [], []>} : vector<8x32xbf16>, vector<32x64xbf16>, vector<8x64xf32> -> vector<8x64xf32>
    %c0_3 = arith.constant 0 : index
    %c0_4 = arith.constant 0 : index
    %4 = vector.load %arg3[%c0_3, %c0_4] : memref<1x64xf32, #tpu.memory_space<vmem>>, vector<1x64xf32>
    %5 = vector.broadcast %4 : vector<1x64xf32> to vector<8x64xf32>
    %6 = arith.addf %3, %5 : vector<8x64xf32>
    %cst_5 = arith.constant 0.000000e+00 : f32
    %7 = vector.broadcast %cst_5 : f32 to vector<8x64xf32>
    %8 = arith.cmpf ogt, %6, %7 : vector<8x64xf32>
    %cst_6 = arith.constant 2.000000e-01 : f32
    %9 = vector.broadcast %cst_6 : f32 to vector<8x64xf32>
    %10 = arith.mulf %9, %6 : vector<8x64xf32>
    %11 = arith.select %8, %6, %10 : vector<8x64xi1>, vector<8x64xf32>
    %c0_7 = arith.constant 0 : index
    %c0_8 = arith.constant 0 : index
    %12 = vector.load %arg7[%c0_7, %c0_8] : memref<8x64xf32, #tpu.memory_space<vmem>>, vector<8x64xf32>
    tpu.vector_store %arg7[%c0_7, %c0_8], %11 {strides = array<i32>} : memref<8x64xf32, #tpu.memory_space<vmem>>, vector<8x64xf32>,
    %13 = arith.truncf %11 : vector<8x64xf32> to vector<8x64xbf16>
    %c0_9 = arith.constant 0 : index
    %c0_10 = arith.constant 0 : index
    %14 = vector.load %arg4[%c0_9, %c0_10] : memref<64x32xbf16, #tpu.memory_space<vmem>>, vector<64x32xbf16>
    %cst_11 = arith.constant dense<0.000000e+00> : vector<8x32xf32>
    %15 = tpu.matmul %13, %14, %cst_11 {dimension_numbers = #tpu.dot_dimension_numbers<[1], [0], [0], [1], [0, 0, 1, 1], [], []>} : vector<8x64xbf16>, vector<64x32xbf16>, vector<8x32xf32> -> vector<8x32xf32>
    %c0_12 = arith.constant 0 : index
    %c0_13 = arith.constant 0 : index
    %16 = vector.load %arg5[%c0_12, %c0_13] : memref<1x32xf32, #tpu.memory_space<vmem>>, vector<1x32xf32>
    %17 = vector.broadcast %16 : vector<1x32xf32> to vector<8x32xf32>
    %18 = arith.addf %15, %17 : vector<8x32xf32>
    %c0_14 = arith.constant 0 : index
    %c0_15 = arith.constant 0 : index
    %19 = vector.load %arg6[%c0_14, %c0_15] : memref<8x32xf32, #tpu.memory_space<vmem>>, vector<8x32xf32>
    tpu.vector_store %arg6[%c0_14, %c0_15], %18 {strides = array<i32>} : memref<8x32xf32, #tpu.memory_space<vmem>>, vector<8x32xf32>,
    return
  }
  func.func @transform_0(%arg0: i32) -> (i32, i32) {
    %c0_i32 = arith.constant 0 : i32
    %c0_i32_0 = arith.constant 0 : i32
    return %arg0, %c0_i32 : i32, i32
  }
  func.func @transform_1(%arg0: i32) -> (i32, i32) {
    %c0_i32 = arith.constant 0 : i32
    %c0_i32_0 = arith.constant 0 : i32
    %c0_i32_1 = arith.constant 0 : i32
    return %c0_i32, %c0_i32_0 : i32, i32
  }
  func.func @transform_2(%arg0: i32) -> (i32, i32) {
    %c0_i32 = arith.constant 0 : i32
    %c0_i32_0 = arith.constant 0 : i32
    %c0_i32_1 = arith.constant 0 : i32
    return %c0_i32, %c0_i32_0 : i32, i32
  }
  func.func @transform_3(%arg0: i32) -> (i32, i32) {
    %c0_i32 = arith.constant 0 : i32
    %c0_i32_0 = arith.constant 0 : i32
    %c0_i32_1 = arith.constant 0 : i32
    return %c0_i32, %c0_i32_0 : i32, i32
  }
  func.func @transform_4(%arg0: i32) -> (i32, i32) {
    %c0_i32 = arith.constant 0 : i32
    %c0_i32_0 = arith.constant 0 : i32
    %c0_i32_1 = arith.constant 0 : i32
    return %c0_i32, %c0_i32_0 : i32, i32
  }
  func.func @transform_5(%arg0: i32) -> (i32, i32) {
    %c0_i32 = arith.constant 0 : i32
    %c0_i32_0 = arith.constant 0 : i32
    return %arg0, %c0_i32 : i32, i32
  }
  func.func @transform_6(%arg0: i32) -> (i32, i32) {
    %c0_i32 = arith.constant 0 : i32
    %c0_i32_0 = arith.constant 0 : i32
    return %arg0, %c0_i32 : i32, i32
  }
}

</mosaic_0001>

<llo_original>
// kernel: _apply_base.1
$region0: #{_apply_base.1}
  #allocation0 [shape = 'u32[]', space=smem, size = 0x4, offset = 0x4, fixed_abs, tag = 'smem constant byte address 0x4 - core index']
  #allocation1 [shape = 'u32[144,128]{1,0:T(1,128)}', space=vmem, size = 0x12000, scoped, tag = 'internal scratch']
  %s0 = inlined_call_operand.vmem [shape: f32[8,32], index: 0, kind: input, shape index: {}]
  %s1 = inlined_call_operand.vmem [shape: bf16[32,64], index: 1, kind: input, shape index: {}]
  %s2 = inlined_call_operand.vmem [shape: f32[1,64], index: 2, kind: input, shape index: {}]
  %s3 = inlined_call_operand.vmem [shape: bf16[64,32], index: 3, kind: input, shape index: {}]
  %s4 = inlined_call_operand.vmem [shape: f32[1,32], index: 4, kind: input, shape index: {}]
  %s5 = inlined_call_operand.hbm [shape: f32[8,32], index: 5, kind: output, shape index: {0}]
  %s6 = inlined_call_operand.hbm [shape: f32[8,64], index: 6, kind: output, shape index: {1}]
  %7 = xla_tuple %s5, %s6
  %s8 = sld [smem:[#allocation0]]
  $region38: #{_apply_base.1} parent=0
    _
  %s10 = ssub.s32 1, %s8
  %s11 = scalar_select 0, %s10, %s8
  $region1: #{_apply_base.1} parent=0
    #allocation2 [shape = 'u8[4096]{0}', space=vmem, size = 0x1000, scoped, tag = 'output window, operand 0, single buffered']
    #allocation3 [shape = 's32[1]{0}', space=sflag, size = 0x4, scoped, tag = 'scoped memory for _apply_base.1']
    #allocation4 [shape = 'u8[4096]{0}', space=vmem, size = 0x1000, scoped, tag = 'output window, operand 1, single buffered']
    #allocation5 [shape = 's32[1]{0}', space=sflag, size = 0x4, scoped, tag = 'scoped memory for _apply_base.1']
    %12 = vsyncpa [#allocation3], 0
    %13 = vsyncpa [#allocation5], 0
    // Predicated region
    $region2: #{_apply_base.1} parent=1 // pred_check
      _
    $region3: #{_apply_base.1} parent=1 // pred_check_branch
      %15 = sbr.rel (0) target = $region5
    $region4: #{_apply_base.1} parent=1 // pred_region
      _
    $region5: #{_apply_base.1} parent=1 // pred_fallthru
      _
    // Predicated region
    $region6: #{_apply_base.1} parent=1 // pred_check
      _
    $region7: #{_apply_base.1} parent=1 // pred_check_branch
      %17 = sbr.rel (0) target = $region9
    $region8: #{_apply_base.1} parent=1 // pred_region
      _
    $region9: #{_apply_base.1} parent=1 // pred_fallthru
      _
    // Predicated region
    $region10: #{_apply_base.1} parent=1 // pred_check
      _
    $region11: #{_apply_base.1} parent=1 // pred_check_branch
      %19 = sbr.rel (0) target = $region13
    $region12: #{_apply_base.1} parent=1 // pred_region
      _
    $region13: #{_apply_base.1} parent=1 // pred_fallthru
      _
    // Predicated region
    $region14: #{_apply_base.1} parent=1 // pred_check
      _
    $region15: #{_apply_base.1} parent=1 // pred_check_branch
      %21 = sbr.rel (0) target = $region17
    $region16: #{_apply_base.1} parent=1 // pred_region
      _
    $region17: #{_apply_base.1} parent=1 // pred_fallthru
      _
    // Predicated region
    $region18: #{_apply_base.1} parent=1 // pred_check
      _
    $region19: #{_apply_base.1} parent=1 // pred_check_branch
      %23 = sbr.rel (0) target = $region21
    $region20: #{_apply_base.1} parent=1 // pred_region
      _
    $region21: #{_apply_base.1} parent=1 // pred_fallthru
      _
    %v25 = vld [vmem:[%s0] sm:$0xff]
    %v26 = vpack.c.bf16 %v25, %v25
    %v27 = vld [vmem:[%s1] sm:$0xf]
    %v28 = vld [vmem:[%s1 + $0x4] sm:$0xf]
    %v29 = vld [vmem:[%s1 + $0x8] sm:$0xf]
    %v30 = vld [vmem:[%s1 + $0xc] sm:$0xf]
    %v31 = vld [vmem:[%s2] sm:$0x1]
    %v33 = vlaneseq
    %v34 = vshrl.u32 %v33, 7
    %v35 = vsub.s32 0, %v34
    %v36 = vrot.slane %v31, %v35
    %v42 = vunpack.c.l.b16 %v27
    %v43 = vunpack.c.l.b16 %v28
    %v44 = vunpack.c.l.b16 %v29
    %v45 = vunpack.c.l.b16 %v30
    %v46 = vpack.c.b16 %v43, %v42
    %v47 = vpack.c.b16 %v45, %v44
    %vm50 = vcmask 261120
    %v52 = vsel %vm50, %v26, 0
    %54 = vmatprep.subr.bf16.mxu0 0
    %55 = vmatpush1.bf16.msra.mxu0 %v46
    %56 = vmatprep.subr.bf16.mxu0 0
    %57 = vmatpush1.bf16.msra.mxu0 %v47
    %58 = vmatprep.subr.bf16.mxu0 0
    %59 = vmatpush1.bf16.msra.mxu0 0
    %60 = vmatprep.subr.bf16.mxu0 0
    %61 = vmatpush1.bf16.msra.mxu0 0
    %62 = vmatprep.subr.bf16.mxu0 0
    %63 = vmatpush1.bf16.msra.mxu0 0
    %64 = vmatprep.subr.bf16.mxu0 0
    %65 = vmatpush1.bf16.msra.mxu0 0
    %66 = vmatprep.subr.bf16.mxu0 0
    %67 = vmatpush1.bf16.msra.mxu0 0
    %68 = vmatprep.subr.bf16.mxu0 0
    %69 = vmatpush1.bf16.msra.mxu0 0
    %70 = vmatprep.subr.bf16.mxu0 0
    %71 = vmatpush1.bf16.msra.mxu0 0
    %72 = vmatprep.subr.bf16.mxu0 0
    %73 = vmatpush1.bf16.msra.mxu0 0
    %74 = vmatprep.subr.bf16.mxu0 0
    %75 = vmatpush1.bf16.msra.mxu0 0
    %76 = vmatprep.subr.bf16.mxu0 0
    %77 = vmatpush1.bf16.msra.mxu0 0
    %78 = vmatprep.subr.bf16.mxu0 0
    %79 = vmatpush1.bf16.msra.mxu0 0
    %80 = vmatprep.subr.bf16.mxu0 0
    %81 = vmatpush1.bf16.msra.mxu0 0
    %82 = vmatprep.subr.bf16.mxu0 0
    %83 = vmatpush1.bf16.msra.mxu0 0
    %84 = vmatprep.subr.bf16.mxu0 0
    %85 = vmatpush1.bf16.msra.mxu0 0
    %86 = vmatprep.mubr.bf16.mxu0 0
    %87 = vmatmul.mubr.bf16.gmra.mrb[0].mxu0 %v52
    %v88 = vpop.f32.mrb[0].mxu0
    %v89 = vadd.f32 %v36, %v88
    %v90 = vpop.f32.mrb[0].mxu0
    %v91 = vpop.f32.mrb[0].mxu0
    %v92 = vpop.f32.mrb[0].mxu0
    %93 = vdwg.mxu0
    %vm94 = vcmp.gt.f32.partialorder %v89, 0.0
    %v95 = vmul.f32 %v89, 0.2
    %v96 = vsel %vm94, %v89, %v95
    %vm97 = vcmask 523264
    %98 = vst.msk [vmem:[#allocation4] sm:$0xff] %vm97, %v96
    %v99 = vpack.c.bf16 %v96, %v96
    %v100 = vld [vmem:[%s3] sm:$0xf]
    %v101 = vld [vmem:[%s3 + $0x4] sm:$0xf]
    %v102 = vld [vmem:[%s3 + $0x8] sm:$0xf]
    %v103 = vld [vmem:[%s3 + $0xc] sm:$0xf]
    %v104 = vld [vmem:[%s3 + $0x10] sm:$0xf]
    %v105 = vld [vmem:[%s3 + $0x14] sm:$0xf]
    %v106 = vld [vmem:[%s3 + $0x18] sm:$0xf]
    %v107 = vld [vmem:[%s3 + $0x1c] sm:$0xf]
    %v108 = vld [vmem:[%s4] sm:$0x1]
    %v110 = vlaneseq
    %v111 = vshrl.u32 %v110, 7
    %v112 = vsub.s32 0, %v111
    %v113 = vrot.slane %v108, %v112
    %v123 = vunpack.c.l.b16 %v100
    %v124 = vunpack.c.l.b16 %v101
    %v125 = vunpack.c.l.b16 %v102
    %v126 = vunpack.c.l.b16 %v103
    %v127 = vunpack.c.l.b16 %v104
    %v128 = vunpack.c.l.b16 %v105
    %v129 = vunpack.c.l.b16 %v106
    %v130 = vunpack.c.l.b16 %v107
    %v131 = vpack.c.b16 %v124, %v123
    %v132 = vpack.c.b16 %v126, %v125
    %v133 = vpack.c.b16 %v128, %v127
    %v134 = vpack.c.b16 %v130, %v129
    %v140 = vsel %vm97, %v99, 0
    %142 = vmatprep.subr.bf16.mxu0 0
    %143 = vmatpush1.bf16.msra.mxu0 %v131
    %144 = vmatprep.subr.bf16.mxu0 0
    %145 = vmatpush1.bf16.msra.mxu0 %v132
    %146 = vmatprep.subr.bf16.mxu0 0
    %147 = vmatpush1.bf16.msra.mxu0 %v133
    %148 = vmatprep.subr.bf16.mxu0 0
    %149 = vmatpush1.bf16.msra.mxu0 %v134
    %150 = vmatprep.subr.bf16.mxu0 0
    %151 = vmatpush1.bf16.msra.mxu0 0
    %152 = vmatprep.subr.bf16.mxu0 0
    %153 = vmatpush1.bf16.msra.mxu0 0
    %154 = vmatprep.subr.bf16.mxu0 0
    %155 = vmatpush1.bf16.msra.mxu0 0
    %156 = vmatprep.subr.bf16.mxu0 0
    %157 = vmatpush1.bf16.msra.mxu0 0
    %158 = vmatprep.subr.bf16.mxu0 0
    %159 = vmatpush1.bf16.msra.mxu0 0
    %160 = vmatprep.subr.bf16.mxu0 0
    %161 = vmatpush1.bf16.msra.mxu0 0
    %162 = vmatprep.subr.bf16.mxu0 0
    %163 = vmatpush1.bf16.msra.mxu0 0
    %164 = vmatprep.subr.bf16.mxu0 0
    %165 = vmatpush1.bf16.msra.mxu0 0
    %166 = vmatprep.subr.bf16.mxu0 0
    %167 = vmatpush1.bf16.msra.mxu0 0
    %168 = vmatprep.subr.bf16.mxu0 0
    %169 = vmatpush1.bf16.msra.mxu0 0
    %170 = vmatprep.subr.bf16.mxu0 0
    %171 = vmatpush1.bf16.msra.mxu0 0
    %172 = vmatprep.subr.bf16.mxu0 0
    %173 = vmatpush1.bf16.msra.mxu0 0
    %174 = vmatprep.mubr.bf16.mxu0 0
    %175 = vmatmul.mubr.bf16.gmra.mrb[0].mxu0 %v140
    %v176 = vpop.f32.mrb[0].mxu0
    %v177 = vadd.f32 %v113, %v176
    %v178 = vpop.f32.mrb[0].mxu0
    %v179 = vpop.f32.mrb[0].mxu0
    %v180 = vpop.f32.mrb[0].mxu0
    %181 = vdwg.mxu0
    %182 = vst.msk [vmem:[#allocation2] sm:$0xff] %vm50, %v177
    // Predicated region
    $region22: #{_apply_base.1} parent=1 // pred_check
      _
    $region23: #{_apply_base.1} parent=1 // pred_check_branch
      %184 = sbr.rel (0) target = $region25
    $region24: #{_apply_base.1} parent=1 // pred_region
      %s186 = ssub.s32 128, 128
      %187 = vsyncadd [#allocation3], %s186
      %s189 = sshll.u32 [#allocation2], 4
      %s190 = int_to_ptr.vmem [resolvable:$true] %s189
      %192 = dma.vmem_to_hbm [thread:$0]  %s190, 128, %s5, [#allocation3]
    $region25: #{_apply_base.1} parent=1 // pred_fallthru
      _
    // Predicated region
    $region26: #{_apply_base.1} parent=1 // pred_check
      _
    $region27: #{_apply_base.1} parent=1 // pred_check_branch
      %194 = sbr.rel (0) target = $region29
    $region28: #{_apply_base.1} parent=1 // pred_region
      %s196 = ssub.s32 128, 128
      %197 = vsyncadd [#allocation5], %s196
      %s199 = sshll.u32 [#allocation4], 4
      %s200 = int_to_ptr.vmem [resolvable:$true] %s199
      %202 = dma.vmem_to_hbm [thread:$0]  %s200, 128, %s6, [#allocation5]
    $region29: #{_apply_base.1} parent=1 // pred_fallthru
      _
    // Predicated region
    $region30: #{_apply_base.1} parent=1 // pred_check
      _
    $region31: #{_apply_base.1} parent=1 // pred_check_branch
      %204 = sbr.rel (0) target = $region33
    $region32: #{_apply_base.1} parent=1 // pred_region
      %205 = dma.done [#allocation3], 128
    $region33: #{_apply_base.1} parent=1 // pred_fallthru
      _
    // Predicated region
    $region34: #{_apply_base.1} parent=1 // pred_check
      _
    $region35: #{_apply_base.1} parent=1 // pred_check_branch
      %207 = sbr.rel (0) target = $region37
    $region36: #{_apply_base.1} parent=1 // pred_region
      %208 = dma.done [#allocation5], 128
    $region37: #{_apply_base.1} parent=1 // pred_fallthru
      _
    %209 = vsyncpa [#allocation3], 1
    %210 = vsyncpa [#allocation5], 1

</llo_original>
